<compile_context>
chip_gen: v7x
topology: tpu7x:2x2x1
jax: 0.10.0
libtpu: 0.0.40
codegen_flags: <defaults>
</compile_context>

<pallas_src>
import math
from functools import partial

import jax
import jax.numpy as jnp
from jax.experimental import pallas as pl
from jax.experimental.pallas import tpu as pltpu

BN_EPS = 1e-5


def _sum(arrs):
    acc = arrs[0]
    for a in arrs[1:]:
        acc = acc + a
    return acc


def _gc_block_kernel(x_ref, w_ref, att_ref, gamma_ref, beta_ref, bias_ref,
                     o_ref, *, batch):
    """Whole GC_Block forward on VMEM-resident tiles.

    x_ref     : (B, N, F) f32 activations (native module layout)
    w_ref     : (2, F, F) f32 per-layer GC weights
    att_ref   : (2, N, N) f32 per-layer attention/adjacency
    gamma_ref : (2, N, F) f32 BN scale  (flattened feature reshaped to N,F)
    beta_ref  : (2, N, F) f32 BN shift
    bias_ref  : (2, 1, F) f32 GC bias row
    o_ref     : (B, N, F) f32
    """
    B = batch
    inv_b = 1.0 / B
    xs = [x_ref[b] for b in range(B)]                      # each (N, F)

    def layer(zs, l):
        w = w_ref[l]                                       # (F, F)
        att = att_ref[l]                                   # (N, N)
        bias = bias_ref[l]                                 # (1, F)
        # GraphConvolution: att @ (z @ W) + bias, per batch element (MXU).
        ys = [jnp.dot(att,
                      jnp.dot(z, w, preferred_element_type=jnp.float32),
                      preferred_element_type=jnp.float32) + bias
              for z in zs]
        # BatchNorm1d (training mode: batch stats over B, biased variance).
        mean = _sum(ys) * inv_b
        ds = [y - mean for y in ys]
        var = _sum([d * d for d in ds]) * inv_b
        scale = jax.lax.rsqrt(var + BN_EPS) * gamma_ref[l]
        shift = beta_ref[l]
        # tanh on EUP; dropout is identity in the deterministic forward.
        return [jnp.tanh(d * scale + shift) for d in ds]

    zs = layer(xs, 0)
    zs = layer(zs, 1)
    for b in range(B):
        o_ref[b] = zs[b] + xs[b]                           # residual


def pack_params(p):
    """Pack PyTorch-shaped parameters for the kernel.

    Run ONCE per weight update (outside the per-forward jit) -- this is the
    hoisted replacement for the old per-call kron/pad/tile packing.
    """
    f32 = lambda a: jnp.asarray(a, jnp.float32)
    N = p["att1"].shape[0]
    F = p["w1"].shape[0]
    return {
        "w":     jnp.stack([f32(p["w1"]), f32(p["w2"])]),                 # (2,F,F)
        "att":   jnp.stack([f32(p["att1"]), f32(p["att2"])]),             # (2,N,N)
        "gamma": jnp.stack([f32(p["gamma1"]).reshape(N, F),
                            f32(p["gamma2"]).reshape(N, F)]),             # (2,N,F)
        "beta":  jnp.stack([f32(p["beta1"]).reshape(N, F),
                            f32(p["beta2"]).reshape(N, F)]),              # (2,N,F)
        "bias":  jnp.stack([f32(p["b1"]).reshape(1, F),
                            f32(p["b2"]).reshape(1, F)]),                 # (2,1,F)
    }


@jax.jit
def gc_block_forward(x, packed):
    """x: (B, node_n, F) float32.  packed: output of pack_params()."""
    B, N, F = x.shape
    vmem = pl.BlockSpec(memory_space=pltpu.MemorySpace.VMEM)

    flops = 2 * B * 2 * (N * F * F + N * N * F)        # 2 layers, 2 matmuls/batch
    param_bytes = sum(int(v.size) * 4 for v in packed.values())
    bytes_accessed = 2 * B * N * F * 4 + param_bytes   # x + out + params

    # Single fused call, everything VMEM-resident (~75 KiB total footprint).
    # No grid: a single graph with BN coupling across the batch has no
    # independent work items to shard across cores.
    return pl.pallas_call(
        partial(_gc_block_kernel, batch=B),
        out_shape=jax.ShapeDtypeStruct((B, N, F), jnp.float32),
        in_specs=[vmem] * 6,
        out_specs=vmem,
        cost_estimate=pl.CostEstimate(
            flops=flops,
            transcendentals=2 * (N * F + B * N * F),   # rsqrt + tanh, 2 layers
            bytes_accessed=bytes_accessed),
    )(x.astype(jnp.float32), packed["w"], packed["att"],
      packed["gamma"], packed["beta"], packed["bias"])


def init_params(key, node_n, feat):
    """Mirrors GraphConvolution.reset_parameters + BatchNorm1d defaults."""
    stdv = 1.0 / math.sqrt(feat)
    ks = jax.random.split(key, 6)

    def unif(k, shape):
        return jax.random.uniform(k, shape, jnp.float32, -stdv, stdv)

    return {
        "w1":   unif(ks[0], (feat, feat)),
        "att1": unif(ks[1], (node_n, node_n)),
        "b1":   unif(ks[2], (feat,)),
        "w2":   unif(ks[3], (feat, feat)),
        "att2": unif(ks[4], (node_n, node_n)),
        "b2":   unif(ks[5], (feat,)),
        "gamma1": jnp.ones((node_n * feat,), jnp.float32),
        "beta1":  jnp.zeros((node_n * feat,), jnp.float32),
        "gamma2": jnp.ones((node_n * feat,), jnp.float32),
        "beta2":  jnp.zeros((node_n * feat,), jnp.float32),
    }


def reference_forward(x, p):
    """Pure-JAX reference mirroring the PyTorch module (f32, train-mode BN)."""
    def gc(inp, w, att, bias):
        support = jnp.einsum('bnf,fg->bng', inp, w)
        return jnp.einsum('nm,bmf->bnf', att, support) + bias

    def bn_tanh(y, gamma, beta):
        b, n, f = y.shape
        yf = y.reshape(b, n * f)
        mean = jnp.mean(yf, axis=0, keepdims=True)
        var = jnp.mean((yf - mean) ** 2, axis=0, keepdims=True)
        yh = (yf - mean) * jax.lax.rsqrt(var + BN_EPS) * gamma + beta
        return jnp.tanh(yh).reshape(b, n, f)

    y = bn_tanh(gc(x, p["w1"], p["att1"], p["b1"]), p["gamma1"], p["beta1"])
    y = bn_tanh(gc(y, p["w2"], p["att2"], p["b2"]), p["gamma2"], p["beta2"])
    return y + x


if __name__ == "__main__":
    B, NODE_N, FEAT = 2, 48, 32        # batch, graph nodes, in_features

    key = jax.random.PRNGKey(0)
    kx, kp = jax.random.split(key)
    x = jax.random.normal(kx, (B, NODE_N, FEAT), jnp.float32)
    params = init_params(kp, NODE_N, FEAT)

    packed = pack_params(params)       # once per weight update, NOT per forward

    out = jax.block_until_ready(gc_block_forward(x, packed))
    ref = jax.block_until_ready(reference_forward(x, params))

    assert out.shape == (B, NODE_N, FEAT)
    assert jnp.allclose(out, ref, atol=1e-3, rtol=1e-3), \
        float(jnp.max(jnp.abs(out - ref)))

    print("KERNEL_OK")
</pallas_src>

<mosaic_0001>
module attributes {stable_mosaic.version = 11 : i64} {
  func.func @_gc_block_kernel(%arg0: memref<2x48x32xf32, #tpu.memory_space<vmem>>, %arg1: memref<2x32x32xf32, #tpu.memory_space<vmem>>, %arg2: memref<2x48x48xf32, #tpu.memory_space<vmem>>, %arg3: memref<2x48x32xf32, #tpu.memory_space<vmem>>, %arg4: memref<2x48x32xf32, #tpu.memory_space<vmem>>, %arg5: memref<2x1x32xf32, #tpu.memory_space<vmem>>, %arg6: memref<2x48x32xf32, #tpu.memory_space<vmem>>) attributes {dimension_semantics = [], scalar_prefetch = 0 : i64, scratch_operands = 0 : i64, tpu.core_type = #tpu.core_type<tc>} {
    %c0 = arith.constant 0 : index
    %c0_0 = arith.constant 0 : index
    %c0_1 = arith.constant 0 : index
    %0 = vector.load %arg0[%c0, %c0_0, %c0_1] : memref<2x48x32xf32, #tpu.memory_space<vmem>>, vector<1x48x32xf32>
    %1 = vector.shape_cast %0 : vector<1x48x32xf32> to vector<48x32xf32>
    %c1 = arith.constant 1 : index
    %c0_2 = arith.constant 0 : index
    %c0_3 = arith.constant 0 : index
    %2 = vector.load %arg0[%c1, %c0_2, %c0_3] : memref<2x48x32xf32, #tpu.memory_space<vmem>>, vector<1x48x32xf32>
    %3 = vector.shape_cast %2 : vector<1x48x32xf32> to vector<48x32xf32>
    %c0_4 = arith.constant 0 : index
    %c0_5 = arith.constant 0 : index
    %c0_6 = arith.constant 0 : index
    %4 = vector.load %arg1[%c0_4, %c0_5, %c0_6] : memref<2x32x32xf32, #tpu.memory_space<vmem>>, vector<1x32x32xf32>
    %5 = vector.shape_cast %4 : vector<1x32x32xf32> to vector<32x32xf32>
    %c0_7 = arith.constant 0 : index
    %c0_8 = arith.constant 0 : index
    %c0_9 = arith.constant 0 : index
    %6 = vector.load %arg2[%c0_7, %c0_8, %c0_9] : memref<2x48x48xf32, #tpu.memory_space<vmem>>, vector<1x48x48xf32>
    %7 = vector.shape_cast %6 : vector<1x48x48xf32> to vector<48x48xf32>
    %c0_10 = arith.constant 0 : index
    %c0_11 = arith.constant 0 : index
    %c0_12 = arith.constant 0 : index
    %8 = vector.load %arg5[%c0_10, %c0_11, %c0_12] : memref<2x1x32xf32, #tpu.memory_space<vmem>>, vector<1x1x32xf32>
    %9 = vector.shape_cast %8 : vector<1x1x32xf32> to vector<1x32xf32>
    %cst = arith.constant dense<0.000000e+00> : vector<48x32xf32>
    %10 = tpu.matmul %1, %5, %cst {dimension_numbers = #tpu.dot_dimension_numbers<[1], [0], [0], [1], [0, 0, 1, 1], [], []>} : vector<48x32xf32>, vector<32x32xf32>, vector<48x32xf32> -> vector<48x32xf32>
    %cst_13 = arith.constant dense<0.000000e+00> : vector<48x32xf32>
    %11 = tpu.matmul %7, %10, %cst_13 {dimension_numbers = #tpu.dot_dimension_numbers<[1], [0], [0], [1], [0, 0, 1, 1], [], []>} : vector<48x48xf32>, vector<48x32xf32>, vector<48x32xf32> -> vector<48x32xf32>
    %12 = vector.broadcast %9 : vector<1x32xf32> to vector<48x32xf32>
    %13 = arith.addf %11, %12 : vector<48x32xf32>
    %cst_14 = arith.constant dense<0.000000e+00> : vector<48x32xf32>
    %14 = tpu.matmul %3, %5, %cst_14 {dimension_numbers = #tpu.dot_dimension_numbers<[1], [0], [0], [1], [0, 0, 1, 1], [], []>} : vector<48x32xf32>, vector<32x32xf32>, vector<48x32xf32> -> vector<48x32xf32>
    %cst_15 = arith.constant dense<0.000000e+00> : vector<48x32xf32>
    %15 = tpu.matmul %7, %14, %cst_15 {dimension_numbers = #tpu.dot_dimension_numbers<[1], [0], [0], [1], [0, 0, 1, 1], [], []>} : vector<48x48xf32>, vector<48x32xf32>, vector<48x32xf32> -> vector<48x32xf32>
    %16 = vector.broadcast %9 : vector<1x32xf32> to vector<48x32xf32>
    %17 = arith.addf %15, %16 : vector<48x32xf32>
    %18 = arith.addf %13, %17 : vector<48x32xf32>
    %cst_16 = arith.constant 5.000000e-01 : f32
    %19 = vector.broadcast %cst_16 : f32 to vector<48x32xf32>
    %20 = arith.mulf %18, %19 : vector<48x32xf32>
    %21 = arith.subf %13, %20 : vector<48x32xf32>
    %22 = arith.subf %17, %20 : vector<48x32xf32>
    %23 = arith.mulf %21, %21 : vector<48x32xf32>
    %24 = arith.mulf %22, %22 : vector<48x32xf32>
    %25 = arith.addf %23, %24 : vector<48x32xf32>
    %cst_17 = arith.constant 5.000000e-01 : f32
    %26 = vector.broadcast %cst_17 : f32 to vector<48x32xf32>
    %27 = arith.mulf %25, %26 : vector<48x32xf32>
    %cst_18 = arith.constant 9.99999974E-6 : f32
    %28 = vector.broadcast %cst_18 : f32 to vector<48x32xf32>
    %29 = arith.addf %27, %28 : vector<48x32xf32>
    %30 = math.rsqrt %29 : vector<48x32xf32>
    %c0_19 = arith.constant 0 : index
    %c0_20 = arith.constant 0 : index
    %c0_21 = arith.constant 0 : index
    %31 = vector.load %arg3[%c0_19, %c0_20, %c0_21] : memref<2x48x32xf32, #tpu.memory_space<vmem>>, vector<1x48x32xf32>
    %32 = vector.shape_cast %31 : vector<1x48x32xf32> to vector<48x32xf32>
    %33 = arith.mulf %30, %32 : vector<48x32xf32>
    %c0_22 = arith.constant 0 : index
    %c0_23 = arith.constant 0 : index
    %c0_24 = arith.constant 0 : index
    %34 = vector.load %arg4[%c0_22, %c0_23, %c0_24] : memref<2x48x32xf32, #tpu.memory_space<vmem>>, vector<1x48x32xf32>
    %35 = vector.shape_cast %34 : vector<1x48x32xf32> to vector<48x32xf32>
    %36 = arith.mulf %21, %33 : vector<48x32xf32>
    %37 = arith.addf %36, %35 : vector<48x32xf32>
    %38 = math.tanh %37 : vector<48x32xf32>
    %39 = arith.mulf %22, %33 : vector<48x32xf32>
    %40 = arith.addf %39, %35 : vector<48x32xf32>
    %41 = math.tanh %40 : vector<48x32xf32>
    %c1_25 = arith.constant 1 : index
    %c0_26 = arith.constant 0 : index
    %c0_27 = arith.constant 0 : index
    %42 = vector.load %arg1[%c1_25, %c0_26, %c0_27] : memref<2x32x32xf32, #tpu.memory_space<vmem>>, vector<1x32x32xf32>
    %43 = vector.shape_cast %42 : vector<1x32x32xf32> to vector<32x32xf32>
    %c1_28 = arith.constant 1 : index
    %c0_29 = arith.constant 0 : index
    %c0_30 = arith.constant 0 : index
    %44 = vector.load %arg2[%c1_28, %c0_29, %c0_30] : memref<2x48x48xf32, #tpu.memory_space<vmem>>, vector<1x48x48xf32>
    %45 = vector.shape_cast %44 : vector<1x48x48xf32> to vector<48x48xf32>
    %c1_31 = arith.constant 1 : index
    %c0_32 = arith.constant 0 : index
    %c0_33 = arith.constant 0 : index
    %46 = vector.load %arg5[%c1_31, %c0_32, %c0_33] : memref<2x1x32xf32, #tpu.memory_space<vmem>>, vector<1x1x32xf32>
    %47 = vector.shape_cast %46 : vector<1x1x32xf32> to vector<1x32xf32>
    %cst_34 = arith.constant dense<0.000000e+00> : vector<48x32xf32>
    %48 = tpu.matmul %38, %43, %cst_34 {dimension_numbers = #tpu.dot_dimension_numbers<[1], [0], [0], [1], [0, 0, 1, 1], [], []>} : vector<48x32xf32>, vector<32x32xf32>, vector<48x32xf32> -> vector<48x32xf32>
    %cst_35 = arith.constant dense<0.000000e+00> : vector<48x32xf32>
    %49 = tpu.matmul %45, %48, %cst_35 {dimension_numbers = #tpu.dot_dimension_numbers<[1], [0], [0], [1], [0, 0, 1, 1], [], []>} : vector<48x48xf32>, vector<48x32xf32>, vector<48x32xf32> -> vector<48x32xf32>
    %50 = vector.broadcast %47 : vector<1x32xf32> to vector<48x32xf32>
    %51 = arith.addf %49, %50 : vector<48x32xf32>
    %cst_36 = arith.constant dense<0.000000e+00> : vector<48x32xf32>
    %52 = tpu.matmul %41, %43, %cst_36 {dimension_numbers = #tpu.dot_dimension_numbers<[1], [0], [0], [1], [0, 0, 1, 1], [], []>} : vector<48x32xf32>, vector<32x32xf32>, vector<48x32xf32> -> vector<48x32xf32>
    %cst_37 = arith.constant dense<0.000000e+00> : vector<48x32xf32>
    %53 = tpu.matmul %45, %52, %cst_37 {dimension_numbers = #tpu.dot_dimension_numbers<[1], [0], [0], [1], [0, 0, 1, 1], [], []>} : vector<48x48xf32>, vector<48x32xf32>, vector<48x32xf32> -> vector<48x32xf32>
    %54 = vector.broadcast %47 : vector<1x32xf32> to vector<48x32xf32>
    %55 = arith.addf %53, %54 : vector<48x32xf32>
    %56 = arith.addf %51, %55 : vector<48x32xf32>
    %cst_38 = arith.constant 5.000000e-01 : f32
    %57 = vector.broadcast %cst_38 : f32 to vector<48x32xf32>
    %58 = arith.mulf %56, %57 : vector<48x32xf32>
    %59 = arith.subf %51, %58 : vector<48x32xf32>
    %60 = arith.subf %55, %58 : vector<48x32xf32>
    %61 = arith.mulf %59, %59 : vector<48x32xf32>
    %62 = arith.mulf %60, %60 : vector<48x32xf32>
    %63 = arith.addf %61, %62 : vector<48x32xf32>
    %cst_39 = arith.constant 5.000000e-01 : f32
    %64 = vector.broadcast %cst_39 : f32 to vector<48x32xf32>
    %65 = arith.mulf %63, %64 : vector<48x32xf32>
    %cst_40 = arith.constant 9.99999974E-6 : f32
    %66 = vector.broadcast %cst_40 : f32 to vector<48x32xf32>
    %67 = arith.addf %65, %66 : vector<48x32xf32>
    %68 = math.rsqrt %67 : vector<48x32xf32>
    %c1_41 = arith.constant 1 : index
    %c0_42 = arith.constant 0 : index
    %c0_43 = arith.constant 0 : index
    %69 = vector.load %arg3[%c1_41, %c0_42, %c0_43] : memref<2x48x32xf32, #tpu.memory_space<vmem>>, vector<1x48x32xf32>
    %70 = vector.shape_cast %69 : vector<1x48x32xf32> to vector<48x32xf32>
    %71 = arith.mulf %68, %70 : vector<48x32xf32>
    %c1_44 = arith.constant 1 : index
    %c0_45 = arith.constant 0 : index
    %c0_46 = arith.constant 0 : index
    %72 = vector.load %arg4[%c1_44, %c0_45, %c0_46] : memref<2x48x32xf32, #tpu.memory_space<vmem>>, vector<1x48x32xf32>
    %73 = vector.shape_cast %72 : vector<1x48x32xf32> to vector<48x32xf32>
    %74 = arith.mulf %59, %71 : vector<48x32xf32>
    %75 = arith.addf %74, %73 : vector<48x32xf32>
    %76 = math.tanh %75 : vector<48x32xf32>
    %77 = arith.mulf %60, %71 : vector<48x32xf32>
    %78 = arith.addf %77, %73 : vector<48x32xf32>
    %79 = math.tanh %78 : vector<48x32xf32>
    %80 = arith.addf %76, %1 : vector<48x32xf32>
    %c0_47 = arith.constant 0 : index
    %c0_48 = arith.constant 0 : index
    %c0_49 = arith.constant 0 : index
    %81 = vector.load %arg6[%c0_47, %c0_48, %c0_49] : memref<2x48x32xf32, #tpu.memory_space<vmem>>, vector<1x48x32xf32>
    %82 = vector.shape_cast %81 : vector<1x48x32xf32> to vector<48x32xf32>
    %83 = vector.shape_cast %80 : vector<48x32xf32> to vector<1x48x32xf32>
    tpu.vector_store %arg6[%c0_47, %c0_48, %c0_49], %83 {strides = array<i32>} : memref<2x48x32xf32, #tpu.memory_space<vmem>>, vector<1x48x32xf32>,
    %84 = arith.addf %79, %3 : vector<48x32xf32>
    %c1_50 = arith.constant 1 : index
    %c0_51 = arith.constant 0 : index
    %c0_52 = arith.constant 0 : index
    %85 = vector.load %arg6[%c1_50, %c0_51, %c0_52] : memref<2x48x32xf32, #tpu.memory_space<vmem>>, vector<1x48x32xf32>
    %86 = vector.shape_cast %85 : vector<1x48x32xf32> to vector<48x32xf32>
    %87 = vector.shape_cast %84 : vector<48x32xf32> to vector<1x48x32xf32>
    tpu.vector_store %arg6[%c1_50, %c0_51, %c0_52], %87 {strides = array<i32>} : memref<2x48x32xf32, #tpu.memory_space<vmem>>, vector<1x48x32xf32>,
    return
  }
}

</mosaic_0001>

<llo_original>
// kernel: gc_block_forward.1
$region0: #{gc_block_forward.1}
  #allocation0 [shape = 'u32[]', space=smem, size = 0x4, offset = 0x4, fixed_abs, tag = 'smem constant byte address 0x4 - core index']
  #allocation1 [shape = 'u32[144,128]{1,0:T(1,128)}', space=vmem, size = 0x12000, scoped, tag = 'internal scratch']
  %s0 = inlined_call_operand.vmem [shape: f32[2,48,32], index: 0, kind: input, shape index: {}]
  %s1 = inlined_call_operand.vmem [shape: f32[2,32,32], index: 1, kind: input, shape index: {}]
  %s2 = inlined_call_operand.vmem [shape: f32[2,48,48], index: 2, kind: input, shape index: {}]
  %s3 = inlined_call_operand.vmem [shape: f32[2,48,32], index: 3, kind: input, shape index: {}]
  %s4 = inlined_call_operand.vmem [shape: f32[2,48,32], index: 4, kind: input, shape index: {}]
  %s5 = inlined_call_operand.vmem [shape: f32[2,1,32], index: 5, kind: input, shape index: {}]
  %s6 = inlined_call_operand.vmem [shape: f32[2,48,32], index: 6, kind: output, shape index: {}]
  %s7 = sld [smem:[#allocation0]]
  $region34: #{gc_block_forward.1} parent=0
    _
  %s9 = ssub.s32 1, %s7
  %s10 = scalar_select 0, %s9, %s7
  // Predicated region
  $region2: #{gc_block_forward.1} parent=0 // pred_check
    _
  $region3: #{gc_block_forward.1} parent=0 // pred_check_branch
    %12 = sbr.rel (0) target = $region5
  $region4: #{gc_block_forward.1} parent=0 // pred_region
    _
  $region5: #{gc_block_forward.1} parent=0 // pred_fallthru
    _
  // Predicated region
  $region6: #{gc_block_forward.1} parent=0 // pred_check
    _
  $region7: #{gc_block_forward.1} parent=0 // pred_check_branch
    %14 = sbr.rel (0) target = $region9
  $region8: #{gc_block_forward.1} parent=0 // pred_region
    _
  $region9: #{gc_block_forward.1} parent=0 // pred_fallthru
    _
  // Predicated region
  $region10: #{gc_block_forward.1} parent=0 // pred_check
    _
  $region11: #{gc_block_forward.1} parent=0 // pred_check_branch
    %16 = sbr.rel (0) target = $region13
  $region12: #{gc_block_forward.1} parent=0 // pred_region
    _
  $region13: #{gc_block_forward.1} parent=0 // pred_fallthru
    _
  // Predicated region
  $region14: #{gc_block_forward.1} parent=0 // pred_check
    _
  $region15: #{gc_block_forward.1} parent=0 // pred_check_branch
    %18 = sbr.rel (0) target = $region17
  $region16: #{gc_block_forward.1} parent=0 // pred_region
    _
  $region17: #{gc_block_forward.1} parent=0 // pred_fallthru
    _
  // Predicated region
  $region18: #{gc_block_forward.1} parent=0 // pred_check
    _
  $region19: #{gc_block_forward.1} parent=0 // pred_check_branch
    %20 = sbr.rel (0) target = $region21
  $region20: #{gc_block_forward.1} parent=0 // pred_region
    _
  $region21: #{gc_block_forward.1} parent=0 // pred_fallthru
    _
  // Predicated region
  $region22: #{gc_block_forward.1} parent=0 // pred_check
    _
  $region23: #{gc_block_forward.1} parent=0 // pred_check_branch
    %22 = sbr.rel (0) target = $region25
  $region24: #{gc_block_forward.1} parent=0 // pred_region
    _
  $region25: #{gc_block_forward.1} parent=0 // pred_fallthru
    _
  %v23 = vld [vmem:[%s0] sm:$0xff]
  %v24 = vld [vmem:[%s0 + $0x8] sm:$0xff]
  %v25 = vld [vmem:[%s0 + $0x10] sm:$0xff]
  %v26 = vld [vmem:[%s0 + $0x18] sm:$0xff]
  %v27 = vld [vmem:[%s0 + $0x20] sm:$0xff]
  %v28 = vld [vmem:[%s0 + $0x28] sm:$0xff]
  %s29 = scalar_lea.vmem %s0, 48
  %v30 = vld [vmem:[%s29] sm:$0xff]
  %v31 = vld [vmem:[%s29 + $0x8] sm:$0xff]
  %v32 = vld [vmem:[%s29 + $0x10] sm:$0xff]
  %v33 = vld [vmem:[%s29 + $0x18] sm:$0xff]
  %v34 = vld [vmem:[%s29 + $0x20] sm:$0xff]
  %v35 = vld [vmem:[%s29 + $0x28] sm:$0xff]
  %v36 = vld [vmem:[%s1] sm:$0xff]
  %v37 = vld [vmem:[%s1 + $0x8] sm:$0xff]
  %v38 = vld [vmem:[%s1 + $0x10] sm:$0xff]
  %v39 = vld [vmem:[%s1 + $0x18] sm:$0xff]
  %v40 = vld [vmem:[%s2] sm:$0xff]
  %v41 = vld [vmem:[%s2 + $0x8] sm:$0xff]
  %v42 = vld [vmem:[%s2 + $0x10] sm:$0xff]
  %v43 = vld [vmem:[%s2 + $0x18] sm:$0xff]
  %v44 = vld [vmem:[%s2 + $0x20] sm:$0xff]
  %v45 = vld [vmem:[%s2 + $0x28] sm:$0xff]
  %v46 = vld [vmem:[%s5] sm:$0x1]
  %vm47 = vcmask 261120
  %v49 = vsel %vm47, %v23, 0
  %v52 = vsel %vm47, %v24, 0
  %v55 = vsel %vm47, %v25, 0
  %v58 = vsel %vm47, %v26, 0
  %v61 = vsel %vm47, %v27, 0
  %v64 = vsel %vm47, %v28, 0
  %66 = vmatprep.subr.mxu0 0.0
  %67 = vmatpush1.msra.mxu0 %v36
  %68 = vmatprep.subr.mxu0 0.0
  %69 = vmatpush1.msra.mxu0 %v37
  %70 = vmatprep.subr.mxu0 0.0
  %71 = vmatpush1.msra.mxu0 %v38
  %72 = vmatprep.subr.mxu0 0.0
  %73 = vmatpush1.msra.mxu0 %v39
  %74 = vmatprep.subr.mxu0 0.0
  %75 = vmatpush1.msra.mxu0 0.0
  %76 = vmatprep.subr.mxu0 0.0
  %77 = vmatpush1.msra.mxu0 0.0
  %78 = vmatprep.subr.mxu0 0.0
  %79 = vmatpush1.msra.mxu0 0.0
  %80 = vmatprep.subr.mxu0 0.0
  %81 = vmatpush1.msra.mxu0 0.0
  %82 = vmatprep.subr.mxu0 0.0
  %83 = vmatpush1.msra.mxu0 0.0
  %84 = vmatprep.subr.mxu0 0.0
  %85 = vmatpush1.msra.mxu0 0.0
  %86 = vmatprep.subr.mxu0 0.0
  %87 = vmatpush1.msra.mxu0 0.0
  %88 = vmatprep.subr.mxu0 0.0
  %89 = vmatpush1.msra.mxu0 0.0
  %90 = vmatprep.subr.mxu0 0.0
  %91 = vmatpush1.msra.mxu0 0.0
  %92 = vmatprep.subr.mxu0 0.0
  %93 = vmatpush1.msra.mxu0 0.0
  %94 = vmatprep.subr.mxu0 0.0
  %95 = vmatpush1.msra.mxu0 0.0
  %96 = vmatprep.subr.mxu0 0.0
  %97 = vmatpush1.msra.mxu0 0.0
  %98 = vmatprep.subr.mxu0 0.0
  %99 = vmatpush1.msra.mxu0 0.0
  %100 = vmatprep.subr.mxu0 0.0
  %101 = vmatpush1.msra.mxu0 0.0
  %102 = vmatprep.subr.mxu0 0.0
  %103 = vmatpush1.msra.mxu0 0.0
  %104 = vmatprep.subr.mxu0 0.0
  %105 = vmatpush1.msra.mxu0 0.0
  %106 = vmatprep.subr.mxu0 0.0
  %107 = vmatpush1.msra.mxu0 0.0
  %108 = vmatprep.subr.mxu0 0.0
  %109 = vmatpush1.msra.mxu0 0.0
  %110 = vmatprep.subr.mxu0 0.0
  %111 = vmatpush1.msra.mxu0 0.0
  %112 = vmatprep.subr.mxu0 0.0
  %113 = vmatpush1.msra.mxu0 0.0
  %114 = vmatprep.subr.mxu0 0.0
  %115 = vmatpush1.msra.mxu0 0.0
  %116 = vmatprep.subr.mxu0 0.0
  %117 = vmatpush1.msra.mxu0 0.0
  %118 = vmatprep.subr.mxu0 0.0
  %119 = vmatpush1.msra.mxu0 0.0
  %120 = vmatprep.subr.mxu0 0.0
  %121 = vmatpush1.msra.mxu0 0.0
  %122 = vmatprep.subr.mxu0 0.0
  %123 = vmatpush1.msra.mxu0 0.0
  %124 = vmatprep.subr.mxu0 0.0
  %125 = vmatpush1.msra.mxu0 0.0
  %126 = vmatprep.subr.mxu0 0.0
  %127 = vmatpush1.msra.mxu0 0.0
  %128 = vmatprep.subr.mxu0 0.0
  %129 = vmatpush1.msra.mxu0 0.0
  %130 = vmatprep.mubr.f32.mxu0 0.0
  %131 = vmatmul.mubr.f32.gmra.mrb[0].mxu0 %v49
  %v132 = vpop.f32.mrb[0].mxu0
  %v133 = vadd.f32 0.0, %v132
  %v134 = vpop.f32.mrb[0].mxu0
  %135 = vmatprep.mubr.f32.mxu0 0.0
  %136 = vmatmul.mubr.f32.gmra.mrb[0].mxu0 %v52
  %v137 = vpop.f32.mrb[0].mxu0
  %v138 = vadd.f32 0.0, %v137
  %v139 = vpop.f32.mrb[0].mxu0
  %140 = vmatprep.mubr.f32.mxu0 0.0
  %141 = vmatmul.mubr.f32.gmra.mrb[0].mxu0 %v55
  %v142 = vpop.f32.mrb[0].mxu0
  %v143 = vadd.f32 0.0, %v142
  %v144 = vpop.f32.mrb[0].mxu0
  %145 = vmatprep.mubr.f32.mxu0 0.0
  %146 = vmatmul.mubr.f32.gmra.mrb[0].mxu0 %v58
  %v147 = vpop.f32.mrb[0].mxu0
  %v148 = vadd.f32 0.0, %v147
  %v149 = vpop.f32.mrb[0].mxu0
  %150 = vmatprep.mubr.f32.mxu0 0.0
  %151 = vmatmul.mubr.f32.gmra.mrb[0].mxu0 %v61
  %v152 = vpop.f32.mrb[0].mxu0
  %v153 = vadd.f32 0.0, %v152
  %v154 = vpop.f32.mrb[0].mxu0
  %155 = vmatprep.mubr.f32.mxu0 0.0
  %156 = vmatmul.mubr.f32.gmra.mrb[0].mxu0 %v64
  %v157 = vpop.f32.mrb[0].mxu0
  %v158 = vadd.f32 0.0, %v157
  %v159 = vpop.f32.mrb[0].mxu0
  %160 = vdwg.mxu0
  %v162 = vlaneseq
  %v163 = vshrl.u32 %v162, 7
  %v164 = vsub.s32 0, %v163
  %v165 = vrot.slane %v46, %v164
  %vm167 = vcmask 392192
  %v169 = vsel %vm167, %v40, 0
  %v172 = vsel %vm167, %v41, 0
  %v175 = vsel %vm167, %v42, 0
  %v178 = vsel %vm167, %v43, 0
  %v181 = vsel %vm167, %v44, 0
  %v184 = vsel %vm167, %v45, 0
  %186 = vmatprep.subr.mxu0 0.0
  %187 = vmatpush1.msra.mxu0 %v133
  %188 = vmatprep.subr.mxu0 0.0
  %189 = vmatpush1.msra.mxu0 %v138
  %190 = vmatprep.subr.mxu0 0.0
  %191 = vmatpush1.msra.mxu0 %v143
  %192 = vmatprep.subr.mxu0 0.0
  %193 = vmatpush1.msra.mxu0 %v148
  %194 = vmatprep.subr.mxu0 0.0
  %195 = vmatpush1.msra.mxu0 %v153
  %196 = vmatprep.subr.mxu0 0.0
  %197 = vmatpush1.msra.mxu0 %v158
  %198 = vmatprep.subr.mxu0 0.0
  %199 = vmatpush1.msra.mxu0 0.0
  %200 = vmatprep.subr.mxu0 0.0
  %201 = vmatpush1.msra.mxu0 0.0
  %202 = vmatprep.subr.mxu0 0.0
  %203 = vmatpush1.msra.mxu0 0.0
  %204 = vmatprep.subr.mxu0 0.0
  %205 = vmatpush1.msra.mxu0 0.0
  %206 = vmatprep.subr.mxu0 0.0
  %207 = vmatpush1.msra.mxu0 0.0
  %208 = vmatprep.subr.mxu0 0.0
  %209 = vmatpush1.msra.mxu0 0.0
  %210 = vmatprep.subr.mxu0 0.0
  %211 = vmatpush1.msra.mxu0 0.0
  %212 = vmatprep.subr.mxu0 0.0
  %213 = vmatpush1.msra.mxu0 0.0
  %214 = vmatprep.subr.mxu0 0.0
  %215 = vmatpush1.msra.mxu0 0.0
  %216 = vmatprep.subr.mxu0 0.0
  %217 = vmatpush1.msra.mxu0 0.0
  %218 = vmatprep.subr.mxu0 0.0
  %219 = vmatpush1.msra.mxu0 0.0
  %220 = vmatprep.subr.mxu0 0.0
  %221 = vmatpush1.msra.mxu0 0.0
  %222 = vmatprep.subr.mxu0 0.0
  %223 = vmatpush1.msra.mxu0 0.0
  %224 = vmatprep.subr.mxu0 0.0
  %225 = vmatpush1.msra.mxu0 0.0
  %226 = vmatprep.subr.mxu0 0.0
  %227 = vmatpush1.msra.mxu0 0.0
  %228 = vmatprep.subr.mxu0 0.0
  %229 = vmatpush1.msra.mxu0 0.0
  %230 = vmatprep.subr.mxu0 0.0
  %231 = vmatpush1.msra.mxu0 0.0
  %232 = vmatprep.subr.mxu0 0.0
  %233 = vmatpush1.msra.mxu0 0.0
  %234 = vmatprep.subr.mxu0 0.0
  %235 = vmatpush1.msra.mxu0 0.0
  %236 = vmatprep.subr.mxu0 0.0
  %237 = vmatpush1.msra.mxu0 0.0
  %238 = vmatprep.subr.mxu0 0.0
  %239 = vmatpush1.msra.mxu0 0.0
  %240 = vmatprep.subr.mxu0 0.0
  %241 = vmatpush1.msra.mxu0 0.0
  %242 = vmatprep.subr.mxu0 0.0
  %243 = vmatpush1.msra.mxu0 0.0
  %244 = vmatprep.subr.mxu0 0.0
  %245 = vmatpush1.msra.mxu0 0.0
  %246 = vmatprep.subr.mxu0 0.0
  %247 = vmatpush1.msra.mxu0 0.0
  %248 = vmatprep.subr.mxu0 0.0
  %249 = vmatpush1.msra.mxu0 0.0
  %250 = vmatprep.mubr.f32.mxu0 0.0
  %251 = vmatmul.mubr.f32.gmra.mrb[0].mxu0 %v169
  %v252 = vpop.f32.mrb[0].mxu0
  %v253 = vadd.f32 %v165, %v252
  %v254 = vpop.f32.mrb[0].mxu0
  %255 = vmatprep.mubr.f32.mxu0 0.0
  %256 = vmatmul.mubr.f32.gmra.mrb[0].mxu0 %v172
  %v257 = vpop.f32.mrb[0].mxu0
  %v258 = vadd.f32 %v165, %v257
  %v259 = vpop.f32.mrb[0].mxu0
  %260 = vmatprep.mubr.f32.mxu0 0.0
  %261 = vmatmul.mubr.f32.gmra.mrb[0].mxu0 %v175
  %v262 = vpop.f32.mrb[0].mxu0
  %v263 = vadd.f32 %v165, %v262
  %v264 = vpop.f32.mrb[0].mxu0
  %265 = vmatprep.mubr.f32.mxu0 0.0
  %266 = vmatmul.mubr.f32.gmra.mrb[0].mxu0 %v178
  %v267 = vpop.f32.mrb[0].mxu0
  %v268 = vadd.f32 %v165, %v267
  %v269 = vpop.f32.mrb[0].mxu0
  %270 = vmatprep.mubr.f32.mxu0 0.0
  %271 = vmatmul.mubr.f32.gmra.mrb[0].mxu0 %v181
  %v272 = vpop.f32.mrb[0].mxu0
  %v273 = vadd.f32 %v165, %v272
  %v274 = vpop.f32.mrb[0].mxu0
  %275 = vmatprep.mubr.f32.mxu0 0.0
  %276 = vmatmul.mubr.f32.gmra.mrb[0].mxu0 %v184
  %v277 = vpop.f32.mrb[0].mxu0
  %v278 = vadd.f32 %v165, %v277
  %v279 = vpop.f32.mrb[0].mxu0
  %280 = vdwg.mxu0
  %v282 = vsel %vm47, %v30, 0
  %v285 = vsel %vm47, %v31, 0
  %v288 = vsel %vm47, %v32, 0
  %v291 = vsel %vm47, %v33, 0
  %v294 = vsel %vm47, %v34, 0
  %v297 = vsel %vm47, %v35, 0
  %299 = vmatprep.subr.mxu0 0.0
  %300 = vmatpush1.msra.mxu0 %v36
  %301 = vmatprep.subr.mxu0 0.0
  %302 = vmatpush1.msra.mxu0 %v37
  %303 = vmatprep.subr.mxu0 0.0
  %304 = vmatpush1.msra.mxu0 %v38
  %305 = vmatprep.subr.mxu0 0.0
  %306 = vmatpush1.msra.mxu0 %v39
  %307 = vmatprep.subr.mxu0 0.0
  %308 = vmatpush1.msra.mxu0 0.0
  %309 = vmatprep.subr.mxu0 0.0
  %310 = vmatpush1.msra.mxu0 0.0
  %311 = vmatprep.subr.mxu0 0.0
  %312 = vmatpush1.msra.mxu0 0.0
  %313 = vmatprep.subr.mxu0 0.0
  %314 = vmatpush1.msra.mxu0 0.0
  %315 = vmatprep.subr.mxu0 0.0
  %316 = vmatpush1.msra.mxu0 0.0
  %317 = vmatprep.subr.mxu0 0.0
  %318 = vmatpush1.msra.mxu0 0.0
  %319 = vmatprep.subr.mxu0 0.0
  %320 = vmatpush1.msra.mxu0 0.0
  %321 = vmatprep.subr.mxu0 0.0
  %322 = vmatpush1.msra.mxu0 0.0
  %323 = vmatprep.subr.mxu0 0.0
  %324 = vmatpush1.msra.mxu0 0.0
  %325 = vmatprep.subr.mxu0 0.0
  %326 = vmatpush1.msra.mxu0 0.0
  %327 = vmatprep.subr.mxu0 0.0
  %328 = vmatpush1.msra.mxu0 0.0
  %329 = vmatprep.subr.mxu0 0.0
  %330 = vmatpush1.msra.mxu0 0.0
  %331 = vmatprep.subr.mxu0 0.0
  %332 = vmatpush1.msra.mxu0 0.0
  %333 = vmatprep.subr.mxu0 0.0
  %334 = vmatpush1.msra.mxu0 0.0
  %335 = vmatprep.subr.mxu0 0.0
  %336 = vmatpush1.msra.mxu0 0.0
  %337 = vmatprep.subr.mxu0 0.0
  %338 = vmatpush1.msra.mxu0 0.0
  %339 = vmatprep.subr.mxu0 0.0
  %340 = vmatpush1.msra.mxu0 0.0
  %341 = vmatprep.subr.mxu0 0.0
  %342 = vmatpush1.msra.mxu0 0.0
  %343 = vmatprep.subr.mxu0 0.0
  %344 = vmatpush1.msra.mxu0 0.0
  %345 = vmatprep.subr.mxu0 0.0
  %346 = vmatpush1.msra.mxu0 0.0
  %347 = vmatprep.subr.mxu0 0.0
  %348 = vmatpush1.msra.mxu0 0.0
  %349 = vmatprep.subr.mxu0 0.0
  %350 = vmatpush1.msra.mxu0 0.0
  %351 = vmatprep.subr.mxu0 0.0
  %352 = vmatpush1.msra.mxu0 0.0
  %353 = vmatprep.subr.mxu0 0.0
  %354 = vmatpush1.msra.mxu0 0.0
  %355 = vmatprep.subr.mxu0 0.0
  %356 = vmatpush1.msra.mxu0 0.0
  %357 = vmatprep.subr.mxu0 0.0
  %358 = vmatpush1.msra.mxu0 0.0
  %359 = vmatprep.subr.mxu0 0.0
  %360 = vmatpush1.msra.mxu0 0.0
  %361 = vmatprep.subr.mxu0 0.0
  %362 = vmatpush1.msra.mxu0 0.0
  %363 = vmatprep.mubr.f32.mxu0 0.0
  %364 = vmatmul.mubr.f32.gmra.mrb[0].mxu0 %v282
  %v365 = vpop.f32.mrb[0].mxu0
  %v366 = vadd.f32 0.0, %v365
  %v367 = vpop.f32.mrb[0].mxu0
  %368 = vmatprep.mubr.f32.mxu0 0.0
  %369 = vmatmul.mubr.f32.gmra.mrb[0].mxu0 %v285
  %v370 = vpop.f32.mrb[0].mxu0
  %v371 = vadd.f32 0.0, %v370
  %v372 = vpop.f32.mrb[0].mxu0
  %373 = vmatprep.mubr.f32.mxu0 0.0
  %374 = vmatmul.mubr.f32.gmra.mrb[0].mxu0 %v288
  %v375 = vpop.f32.mrb[0].mxu0
  %v376 = vadd.f32 0.0, %v375
  %v377 = vpop.f32.mrb[0].mxu0
  %378 = vmatprep.mubr.f32.mxu0 0.0
  %379 = vmatmul.mubr.f32.gmra.mrb[0].mxu0 %v291
  %v380 = vpop.f32.mrb[0].mxu0
  %v381 = vadd.f32 0.0, %v380
  %v382 = vpop.f32.mrb[0].mxu0
  %383 = vmatprep.mubr.f32.mxu0 0.0
  %384 = vmatmul.mubr.f32.gmra.mrb[0].mxu0 %v294
  %v385 = vpop.f32.mrb[0].mxu0
  %v386 = vadd.f32 0.0, %v385
  %v387 = vpop.f32.mrb[0].mxu0
  %388 = vmatprep.mubr.f32.mxu0 0.0
  %389 = vmatmul.mubr.f32.gmra.mrb[0].mxu0 %v297
  %v390 = vpop.f32.mrb[0].mxu0
  %v391 = vadd.f32 0.0, %v390
  %v392 = vpop.f32.mrb[0].mxu0
  %393 = vdwg.mxu0
  %394 = vmatprep.subr.mxu0 0.0
  %395 = vmatpush1.msra.mxu0 %v366
  %396 = vmatprep.subr.mxu0 0.0
  %397 = vmatpush1.msra.mxu0 %v371
  %398 = vmatprep.subr.mxu0 0.0
  %399 = vmatpush1.msra.mxu0 %v376
  %400 = vmatprep.subr.mxu0 0.0
  %401 = vmatpush1.msra.mxu0 %v381
  %402 = vmatprep.subr.mxu0 0.0
  %403 = vmatpush1.msra.mxu0 %v386
  %404 = vmatprep.subr.mxu0 0.0
  %405 = vmatpush1.msra.mxu0 %v391
  %406 = vmatprep.subr.mxu0 0.0
  %407 = vmatpush1.msra.mxu0 0.0
  %408 = vmatprep.subr.mxu0 0.0
  %409 = vmatpush1.msra.mxu0 0.0
  %410 = vmatprep.subr.mxu0 0.0
  %411 = vmatpush1.msra.mxu0 0.0
  %412 = vmatprep.subr.mxu0 0.0
  %413 = vmatpush1.msra.mxu0 0.0
  %414 = vmatprep.subr.mxu0 0.0
  %415 = vmatpush1.msra.mxu0 0.0
  %416 = vmatprep.subr.mxu0 0.0
  %417 = vmatpush1.msra.mxu0 0.0
  %418 = vmatprep.subr.mxu0 0.0
  %419 = vmatpush1.msra.mxu0 0.0
  %420 = vmatprep.subr.mxu0 0.0
  %421 = vmatpush1.msra.mxu0 0.0
  %422 = vmatprep.subr.mxu0 0.0
  %423 = vmatpush1.msra.mxu0 0.0
  %424 = vmatprep.subr.mxu0 0.0
  %425 = vmatpush1.msra.mxu0 0.0
  %426 = vmatprep.subr.mxu0 0.0
  %427 = vmatpush1.msra.mxu0 0.0
  %428 = vmatprep.subr.mxu0 0.0
  %429 = vmatpush1.msra.mxu0 0.0
  %430 = vmatprep.subr.mxu0 0.0
  %431 = vmatpush1.msra.mxu0 0.0
  %432 = vmatprep.subr.mxu0 0.0
  %433 = vmatpush1.msra.mxu0 0.0
  %434 = vmatprep.subr.mxu0 0.0
  %435 = vmatpush1.msra.mxu0 0.0
  %436 = vmatprep.subr.mxu0 0.0
  %437 = vmatpush1.msra.mxu0 0.0
  %438 = vmatprep.subr.mxu0 0.0
  %439 = vmatpush1.msra.mxu0 0.0
  %440 = vmatprep.subr.mxu0 0.0
  %441 = vmatpush1.msra.mxu0 0.0
  %442 = vmatprep.subr.mxu0 0.0
  %443 = vmatpush1.msra.mxu0 0.0
  %444 = vmatprep.subr.mxu0 0.0
  %445 = vmatpush1.msra.mxu0 0.0
  %446 = vmatprep.subr.mxu0 0.0
  %447 = vmatpush1.msra.mxu0 0.0
  %448 = vmatprep.subr.mxu0 0.0
  %449 = vmatpush1.msra.mxu0 0.0
  %450 = vmatprep.subr.mxu0 0.0
  %451 = vmatpush1.msra.mxu0 0.0
  %452 = vmatprep.subr.mxu0 0.0
  %453 = vmatpush1.msra.mxu0 0.0
  %454 = vmatprep.subr.mxu0 0.0
  %455 = vmatpush1.msra.mxu0 0.0
  %456 = vmatprep.subr.mxu0 0.0
  %457 = vmatpush1.msra.mxu0 0.0
  %458 = vmatprep.mubr.f32.mxu0 0.0
  %459 = vmatmul.mubr.f32.gmra.mrb[0].mxu0 %v169
  %v460 = vpop.f32.mrb[0].mxu0
  %v461 = vadd.f32 %v165, %v460
  %v462 = vpop.f32.mrb[0].mxu0
  %463 = vmatprep.mubr.f32.mxu0 0.0
  %464 = vmatmul.mubr.f32.gmra.mrb[0].mxu0 %v172
  %v465 = vpop.f32.mrb[0].mxu0
  %v466 = vadd.f32 %v165, %v465
  %v467 = vpop.f32.mrb[0].mxu0
  %468 = vmatprep.mubr.f32.mxu0 0.0
  %469 = vmatmul.mubr.f32.gmra.mrb[0].mxu0 %v175
  %v470 = vpop.f32.mrb[0].mxu0
  %v471 = vadd.f32 %v165, %v470
  %v472 = vpop.f32.mrb[0].mxu0
  %473 = vmatprep.mubr.f32.mxu0 0.0
  %474 = vmatmul.mubr.f32.gmra.mrb[0].mxu0 %v178
  %v475 = vpop.f32.mrb[0].mxu0
  %v476 = vadd.f32 %v165, %v475
  %v477 = vpop.f32.mrb[0].mxu0
  %478 = vmatprep.mubr.f32.mxu0 0.0
  %479 = vmatmul.mubr.f32.gmra.mrb[0].mxu0 %v181
  %v480 = vpop.f32.mrb[0].mxu0
  %v481 = vadd.f32 %v165, %v480
  %v482 = vpop.f32.mrb[0].mxu0
  %483 = vmatprep.mubr.f32.mxu0 0.0
  %484 = vmatmul.mubr.f32.gmra.mrb[0].mxu0 %v184
  %v485 = vpop.f32.mrb[0].mxu0
  %v486 = vadd.f32 %v165, %v485
  %v487 = vpop.f32.mrb[0].mxu0
  %488 = vdwg.mxu0
  %v489 = vadd.f32 %v253, %v461
  %v490 = vadd.f32 %v258, %v466
  %v491 = vadd.f32 %v263, %v471
  %v492 = vadd.f32 %v268, %v476
  %v493 = vadd.f32 %v273, %v481
  %v494 = vadd.f32 %v278, %v486
  %v495 = vmul.f32 %v489, 0.5
  %v496 = vmul.f32 %v490, 0.5
  %v497 = vmul.f32 %v491, 0.5
  %v498 = vmul.f32 %v492, 0.5
  %v499 = vmul.f32 %v493, 0.5
  %v500 = vmul.f32 %v494, 0.5
  %v501 = vsub.f32 %v253, %v495
  %v502 = vsub.f32 %v258, %v496
  %v503 = vsub.f32 %v263, %v497
  %v504 = vsub.f32 %v268, %v498
  %v505 = vsub.f32 %v273, %v499
  %v506 = vsub.f32 %v278, %v500
  %v507 = vsub.f32 %v461, %v495
  %v508 = vsub.f32 %v466, %v496
  %v509 = vsub.f32 %v471, %v497
  %v510 = vsub.f32 %v476, %v498
  %v511 = vsub.f32 %v481, %v499
  %v512 = vsub.f32 %v486, %v500
  %v513 = vmul.f32 %v501, %v501
  %v514 = vmul.f32 %v502, %v502
  %v515 = vmul.f32 %v503, %v503
  %v516 = vmul.f32 %v504, %v504
  %v517 = vmul.f32 %v505, %v505
  %v518 = vmul.f32 %v506, %v506
  %v519 = vmul.f32 %v507, %v507
  %v520 = vmul.f32 %v508, %v508
  %v521 = vmul.f32 %v509, %v509
  %v522 = vmul.f32 %v510, %v510
  %v523 = vmul.f32 %v511, %v511
  %v524 = vmul.f32 %v512, %v512
  %v525 = vadd.f32 %v513, %v519
  %v526 = vadd.f32 %v514, %v520
  %v527 = vadd.f32 %v515, %v521
  %v528 = vadd.f32 %v516, %v522
  %v529 = vadd.f32 %v517, %v523
  %v530 = vadd.f32 %v518, %v524
  %v531 = vmul.f32 %v525, 0.5
  %v532 = vmul.f32 %v526, 0.5
  %v533 = vmul.f32 %v527, 0.5
  %v534 = vmul.f32 %v528, 0.5
  %v535 = vmul.f32 %v529, 0.5
  %v536 = vmul.f32 %v530, 0.5
  %v537 = vadd.f32 %v531, 1e-05
  %v538 = vadd.f32 %v532, 1e-05
  %v539 = vadd.f32 %v533, 1e-05
  %v540 = vadd.f32 %v534, 1e-05
  %v541 = vadd.f32 %v535, 1e-05
  %v542 = vadd.f32 %v536, 1e-05
  %v543 = vrsqrt.pop %v537
  %v544 = vrsqrt.pop %v538
  %v545 = vrsqrt.pop %v539
  %v546 = vrsqrt.pop %v540
  %v547 = vrsqrt.pop %v541
  %v548 = vrsqrt.pop %v542
  %v549 = vld [vmem:[%s3] sm:$0xff]
  %v550 = vld [vmem:[%s3 + $0x8] sm:$0xff]
  %v551 = vld [vmem:[%s3 + $0x10] sm:$0xff]
  %v552 = vld [vmem:[%s3 + $0x18] sm:$0xff]
  %v553 = vld [vmem:[%s3 + $0x20] sm:$0xff]
  %v554 = vld [vmem:[%s3 + $0x28] sm:$0xff]
  %v555 = vmul.f32 %v543, %v549
  %v556 = vmul.f32 %v544, %v550
  %v557 = vmul.f32 %v545, %v551
  %v558 = vmul.f32 %v546, %v552
  %v559 = vmul.f32 %v547, %v553
  %v560 = vmul.f32 %v548, %v554
  %v561 = vld [vmem:[%s4] sm:$0xff]
  %v562 = vld [vmem:[%s4 + $0x8] sm:$0xff]
  %v563 = vld [vmem:[%s4 + $0x10] sm:$0xff]
  %v564 = vld [vmem:[%s4 + $0x18] sm:$0xff]
  %v565 = vld [vmem:[%s4 + $0x20] sm:$0xff]
  %v566 = vld [vmem:[%s4 + $0x28] sm:$0xff]
  %v567 = vmul.f32 %v501, %v555
  %v568 = vmul.f32 %v502, %v556
  %v569 = vmul.f32 %v503, %v557
  %v570 = vmul.f32 %v504, %v558
  %v571 = vmul.f32 %v505, %v559
  %v572 = vmul.f32 %v506, %v560
  %v573 = vadd.f32 %v567, %v561
  %v574 = vadd.f32 %v568, %v562
  %v575 = vadd.f32 %v569, %v563
  %v576 = vadd.f32 %v570, %v564
  %v577 = vadd.f32 %v571, %v565
  %v578 = vadd.f32 %v572, %v566
  %v579 = vtanh.pop %v573
  %v580 = vtanh.pop %v574
  %v581 = vtanh.pop %v575
  %v582 = vtanh.pop %v576
  %v583 = vtanh.pop %v577
  %v584 = vtanh.pop %v578
  %v585 = vmul.f32 %v507, %v555
  %v586 = vmul.f32 %v508, %v556
  %v587 = vmul.f32 %v509, %v557
  %v588 = vmul.f32 %v510, %v558
  %v589 = vmul.f32 %v511, %v559
  %v590 = vmul.f32 %v512, %v560
  %v591 = vadd.f32 %v585, %v561
  %v592 = vadd.f32 %v586, %v562
  %v593 = vadd.f32 %v587, %v563
  %v594 = vadd.f32 %v588, %v564
  %v595 = vadd.f32 %v589, %v565
  %v596 = vadd.f32 %v590, %v566
  %v597 = vtanh.pop %v591
  %v598 = vtanh.pop %v592
  %v599 = vtanh.pop %v593
  %v600 = vtanh.pop %v594
  %v601 = vtanh.pop %v595
  %v602 = vtanh.pop %v596
  %s603 = scalar_lea.vmem %s1, 32
  %v604 = vld [vmem:[%s603] sm:$0xff]
  %v605 = vld [vmem:[%s603 + $0x8] sm:$0xff]
  %v606 = vld [vmem:[%s603 + $0x10] sm:$0xff]
  %v607 = vld [vmem:[%s603 + $0x18] sm:$0xff]
  %s608 = scalar_lea.vmem %s2, 48
  %v609 = vld [vmem:[%s608] sm:$0xff]
  %v610 = vld [vmem:[%s608 + $0x8] sm:$0xff]
  %v611 = vld [vmem:[%s608 + $0x10] sm:$0xff]
  %v612 = vld [vmem:[%s608 + $0x18] sm:$0xff]
  %v613 = vld [vmem:[%s608 + $0x20] sm:$0xff]
  %v614 = vld [vmem:[%s608 + $0x28] sm:$0xff]
  %s615 = scalar_lea.vmem %s5, 1
  %v616 = vld [vmem:[%s615] sm:$0x1]
  %v618 = vsel %vm47, %v579, 0
  %v621 = vsel %vm47, %v580, 0
  %v624 = vsel %vm47, %v581, 0
  %v627 = vsel %vm47, %v582, 0
  %v630 = vsel %vm47, %v583, 0
  %v633 = vsel %vm47, %v584, 0
  %635 = vmatprep.subr.mxu0 0.0
  %636 = vmatpush1.msra.mxu0 %v604
  %637 = vmatprep.subr.mxu0 0.0
  %638 = vmatpush1.msra.mxu0 %v605
  %639 = vmatprep.subr.mxu0 0.0
  %640 = vmatpush1.msra.mxu0 %v606
  %641 = vmatprep.subr.mxu0 0.0
  %642 = vmatpush1.msra.mxu0 %v607
  %643 = vmatprep.subr.mxu0 0.0
  %644 = vmatpush1.msra.mxu0 0.0
  %645 = vmatprep.subr.mxu0 0.0
  %646 = vmatpush1.msra.mxu0 0.0
  %647 = vmatprep.subr.mxu0 0.0
  %648 = vmatpush1.msra.mxu0 0.0
  %649 = vmatprep.subr.mxu0 0.0
  %650 = vmatpush1.msra.mxu0 0.0
  %651 = vmatprep.subr.mxu0 0.0
  %652 = vmatpush1.msra.mxu0 0.0
  %653 = vmatprep.subr.mxu0 0.0
  %654 = vmatpush1.msra.mxu0 0.0
  %655 = vmatprep.subr.mxu0 0.0
  %656 = vmatpush1.msra.mxu0 0.0
  %657 = vmatprep.subr.mxu0 0.0
  %658 = vmatpush1.msra.mxu0 0.0
  %659 = vmatprep.subr.mxu0 0.0
  %660 = vmatpush1.msra.mxu0 0.0
  %661 = vmatprep.subr.mxu0 0.0
  %662 = vmatpush1.msra.mxu0 0.0
  %663 = vmatprep.subr.mxu0 0.0
  %664 = vmatpush1.msra.mxu0 0.0
  %665 = vmatprep.subr.mxu0 0.0
  %666 = vmatpush1.msra.mxu0 0.0
  %667 = vmatprep.subr.mxu0 0.0
  %668 = vmatpush1.msra.mxu0 0.0
  %669 = vmatprep.subr.mxu0 0.0
  %670 = vmatpush1.msra.mxu0 0.0
  %671 = vmatprep.subr.mxu0 0.0
  %672 = vmatpush1.msra.mxu0 0.0
  %673 = vmatprep.subr.mxu0 0.0
  %674 = vmatpush1.msra.mxu0 0.0
  %675 = vmatprep.subr.mxu0 0.0
  %676 = vmatpush1.msra.mxu0 0.0
  %677 = vmatprep.subr.mxu0 0.0
  %678 = vmatpush1.msra.mxu0 0.0
  %679 = vmatprep.subr.mxu0 0.0
  %680 = vmatpush1.msra.mxu0 0.0
  %681 = vmatprep.subr.mxu0 0.0
  %682 = vmatpush1.msra.mxu0 0.0
  %683 = vmatprep.subr.mxu0 0.0
  %684 = vmatpush1.msra.mxu0 0.0
  %685 = vmatprep.subr.mxu0 0.0
  %686 = vmatpush1.msra.mxu0 0.0
  %687 = vmatprep.subr.mxu0 0.0
  %688 = vmatpush1.msra.mxu0 0.0
  %689 = vmatprep.subr.mxu0 0.0
  %690 = vmatpush1.msra.mxu0 0.0
  %691 = vmatprep.subr.mxu0 0.0
  %692 = vmatpush1.msra.mxu0 0.0
  %693 = vmatprep.subr.mxu0 0.0
  %694 = vmatpush1.msra.mxu0 0.0
  %695 = vmatprep.subr.mxu0 0.0
  %696 = vmatpush1.msra.mxu0 0.0
  %697 = vmatprep.subr.mxu0 0.0
  %698 = vmatpush1.msra.mxu0 0.0
  %699 = vmatprep.mubr.f32.mxu0 0.0
  %700 = vmatmul.mubr.f32.gmra.mrb[0].mxu0 %v618
  %v701 = vpop.f32.mrb[0].mxu0
  %v702 = vadd.f32 0.0, %v701
  %v703 = vpop.f32.mrb[0].mxu0
  %704 = vmatprep.mubr.f32.mxu0 0.0
  %705 = vmatmul.mubr.f32.gmra.mrb[0].mxu0 %v621
  %v706 = vpop.f32.mrb[0].mxu0
  %v707 = vadd.f32 0.0, %v706
  %v708 = vpop.f32.mrb[0].mxu0
  %709 = vmatprep.mubr.f32.mxu0 0.0
  %710 = vmatmul.mubr.f32.gmra.mrb[0].mxu0 %v624
  %v711 = vpop.f32.mrb[0].mxu0
  %v712 = vadd.f32 0.0, %v711
  %v713 = vpop.f32.mrb[0].mxu0
  %714 = vmatprep.mubr.f32.mxu0 0.0
  %715 = vmatmul.mubr.f32.gmra.mrb[0].mxu0 %v627
  %v716 = vpop.f32.mrb[0].mxu0
  %v717 = vadd.f32 0.0, %v716
  %v718 = vpop.f32.mrb[0].mxu0
  %719 = vmatprep.mubr.f32.mxu0 0.0
  %720 = vmatmul.mubr.f32.gmra.mrb[0].mxu0 %v630
  %v721 = vpop.f32.mrb[0].mxu0
  %v722 = vadd.f32 0.0, %v721
  %v723 = vpop.f32.mrb[0].mxu0
  %724 = vmatprep.mubr.f32.mxu0 0.0
  %725 = vmatmul.mubr.f32.gmra.mrb[0].mxu0 %v633
  %v726 = vpop.f32.mrb[0].mxu0
  %v727 = vadd.f32 0.0, %v726
  %v728 = vpop.f32.mrb[0].mxu0
  %729 = vdwg.mxu0
  %v731 = vlaneseq
  %v732 = vshrl.u32 %v731, 7
  %v733 = vsub.s32 0, %v732
  %v734 = vrot.slane %v616, %v733
  %v737 = vsel %vm167, %v609, 0
  %v740 = vsel %vm167, %v610, 0
  %v743 = vsel %vm167, %v611, 0
  %v746 = vsel %vm167, %v612, 0
  %v749 = vsel %vm167, %v613, 0
  %v752 = vsel %vm167, %v614, 0
  %754 = vmatprep.subr.mxu0 0.0
  %755 = vmatpush1.msra.mxu0 %v702
  %756 = vmatprep.subr.mxu0 0.0
  %757 = vmatpush1.msra.mxu0 %v707
  %758 = vmatprep.subr.mxu0 0.0
  %759 = vmatpush1.msra.mxu0 %v712
  %760 = vmatprep.subr.mxu0 0.0
  %761 = vmatpush1.msra.mxu0 %v717
  %762 = vmatprep.subr.mxu0 0.0
  %763 = vmatpush1.msra.mxu0 %v722
  %764 = vmatprep.subr.mxu0 0.0
  %765 = vmatpush1.msra.mxu0 %v727
  %766 = vmatprep.subr.mxu0 0.0
  %767 = vmatpush1.msra.mxu0 0.0
  %768 = vmatprep.subr.mxu0 0.0
  %769 = vmatpush1.msra.mxu0 0.0
  %770 = vmatprep.subr.mxu0 0.0
  %771 = vmatpush1.msra.mxu0 0.0
  %772 = vmatprep.subr.mxu0 0.0
  %773 = vmatpush1.msra.mxu0 0.0
  %774 = vmatprep.subr.mxu0 0.0
  %775 = vmatpush1.msra.mxu0 0.0
  %776 = vmatprep.subr.mxu0 0.0
  %777 = vmatpush1.msra.mxu0 0.0
  %778 = vmatprep.subr.mxu0 0.0
  %779 = vmatpush1.msra.mxu0 0.0
  %780 = vmatprep.subr.mxu0 0.0
  %781 = vmatpush1.msra.mxu0 0.0
  %782 = vmatprep.subr.mxu0 0.0
  %783 = vmatpush1.msra.mxu0 0.0
  %784 = vmatprep.subr.mxu0 0.0
  %785 = vmatpush1.msra.mxu0 0.0
  %786 = vmatprep.subr.mxu0 0.0
  %787 = vmatpush1.msra.mxu0 0.0
  %788 = vmatprep.subr.mxu0 0.0
  %789 = vmatpush1.msra.mxu0 0.0
  %790 = vmatprep.subr.mxu0 0.0
  %791 = vmatpush1.msra.mxu0 0.0
  %792 = vmatprep.subr.mxu0 0.0
  %793 = vmatpush1.msra.mxu0 0.0
  %794 = vmatprep.subr.mxu0 0.0
  %795 = vmatpush1.msra.mxu0 0.0
  %796 = vmatprep.subr.mxu0 0.0
  %797 = vmatpush1.msra.mxu0 0.0
  %798 = vmatprep.subr.mxu0 0.0
  %799 = vmatpush1.msra.mxu0 0.0
  %800 = vmatprep.subr.mxu0 0.0
  %801 = vmatpush1.msra.mxu0 0.0
  %802 = vmatprep.subr.mxu0 0.0
  %803 = vmatpush1.msra.mxu0 0.0
  %804 = vmatprep.subr.mxu0 0.0
  %805 = vmatpush1.msra.mxu0 0.0
  %806 = vmatprep.subr.mxu0 0.0
  %807 = vmatpush1.msra.mxu0 0.0
  %808 = vmatprep.subr.mxu0 0.0
  %809 = vmatpush1.msra.mxu0 0.0
  %810 = vmatprep.subr.mxu0 0.0
  %811 = vmatpush1.msra.mxu0 0.0
  %812 = vmatprep.subr.mxu0 0.0
  %813 = vmatpush1.msra.mxu0 0.0
  %814 = vmatprep.subr.mxu0 0.0
  %815 = vmatpush1.msra.mxu0 0.0
  %816 = vmatprep.subr.mxu0 0.0
  %817 = vmatpush1.msra.mxu0 0.0
  %818 = vmatprep.mubr.f32.mxu0 0.0
  %819 = vmatmul.mubr.f32.gmra.mrb[0].mxu0 %v737
  %v820 = vpop.f32.mrb[0].mxu0
  %v821 = vadd.f32 %v734, %v820
  %v822 = vpop.f32.mrb[0].mxu0
  %823 = vmatprep.mubr.f32.mxu0 0.0
  %824 = vmatmul.mubr.f32.gmra.mrb[0].mxu0 %v740
  %v825 = vpop.f32.mrb[0].mxu0
  %v826 = vadd.f32 %v734, %v825
  %v827 = vpop.f32.mrb[0].mxu0
  %828 = vmatprep.mubr.f32.mxu0 0.0
  %829 = vmatmul.mubr.f32.gmra.mrb[0].mxu0 %v743
  %v830 = vpop.f32.mrb[0].mxu0
  %v831 = vadd.f32 %v734, %v830
  %v832 = vpop.f32.mrb[0].mxu0
  %833 = vmatprep.mubr.f32.mxu0 0.0
  %834 = vmatmul.mubr.f32.gmra.mrb[0].mxu0 %v746
  %v835 = vpop.f32.mrb[0].mxu0
  %v836 = vadd.f32 %v734, %v835
  %v837 = vpop.f32.mrb[0].mxu0
  %838 = vmatprep.mubr.f32.mxu0 0.0
  %839 = vmatmul.mubr.f32.gmra.mrb[0].mxu0 %v749
  %v840 = vpop.f32.mrb[0].mxu0
  %v841 = vadd.f32 %v734, %v840
  %v842 = vpop.f32.mrb[0].mxu0
  %843 = vmatprep.mubr.f32.mxu0 0.0
  %844 = vmatmul.mubr.f32.gmra.mrb[0].mxu0 %v752
  %v845 = vpop.f32.mrb[0].mxu0
  %v846 = vadd.f32 %v734, %v845
  %v847 = vpop.f32.mrb[0].mxu0
  %848 = vdwg.mxu0
  %v850 = vsel %vm47, %v597, 0
  %v853 = vsel %vm47, %v598, 0
  %v856 = vsel %vm47, %v599, 0
  %v859 = vsel %vm47, %v600, 0
  %v862 = vsel %vm47, %v601, 0
  %v865 = vsel %vm47, %v602, 0
  %867 = vmatprep.subr.mxu0 0.0
  %868 = vmatpush1.msra.mxu0 %v604
  %869 = vmatprep.subr.mxu0 0.0
  %870 = vmatpush1.msra.mxu0 %v605
  %871 = vmatprep.subr.mxu0 0.0
  %872 = vmatpush1.msra.mxu0 %v606
  %873 = vmatprep.subr.mxu0 0.0
  %874 = vmatpush1.msra.mxu0 %v607
  %875 = vmatprep.subr.mxu0 0.0
  %876 = vmatpush1.msra.mxu0 0.0
  %877 = vmatprep.subr.mxu0 0.0
  %878 = vmatpush1.msra.mxu0 0.0
  %879 = vmatprep.subr.mxu0 0.0
  %880 = vmatpush1.msra.mxu0 0.0
  %881 = vmatprep.subr.mxu0 0.0
  %882 = vmatpush1.msra.mxu0 0.0
  %883 = vmatprep.subr.mxu0 0.0
  %884 = vmatpush1.msra.mxu0 0.0
  %885 = vmatprep.subr.mxu0 0.0
  %886 = vmatpush1.msra.mxu0 0.0
  %887 = vmatprep.subr.mxu0 0.0
  %888 = vmatpush1.msra.mxu0 0.0
  %889 = vmatprep.subr.mxu0 0.0
  %890 = vmatpush1.msra.mxu0 0.0
  %891 = vmatprep.subr.mxu0 0.0
  %892 = vmatpush1.msra.mxu0 0.0
  %893 = vmatprep.subr.mxu0 0.0
  %894 = vmatpush1.msra.mxu0 0.0
  %895 = vmatprep.subr.mxu0 0.0
  %896 = vmatpush1.msra.mxu0 0.0
  %897 = vmatprep.subr.mxu0 0.0
  %898 = vmatpush1.msra.mxu0 0.0
  %899 = vmatprep.subr.mxu0 0.0
  %900 = vmatpush1.msra.mxu0 0.0
  %901 = vmatprep.subr.mxu0 0.0
  %902 = vmatpush1.msra.mxu0 0.0
  %903 = vmatprep.subr.mxu0 0.0
  %904 = vmatpush1.msra.mxu0 0.0
  %905 = vmatprep.subr.mxu0 0.0
  %906 = vmatpush1.msra.mxu0 0.0
  %907 = vmatprep.subr.mxu0 0.0
  %908 = vmatpush1.msra.mxu0 0.0
  %909 = vmatprep.subr.mxu0 0.0
  %910 = vmatpush1.msra.mxu0 0.0
  %911 = vmatprep.subr.mxu0 0.0
  %912 = vmatpush1.msra.mxu0 0.0
  %913 = vmatprep.subr.mxu0 0.0
  %914 = vmatpush1.msra.mxu0 0.0
  %915 = vmatprep.subr.mxu0 0.0
  %916 = vmatpush1.msra.mxu0 0.0
  %917 = vmatprep.subr.mxu0 0.0
  %918 = vmatpush1.msra.mxu0 0.0
  %919 = vmatprep.subr.mxu0 0.0
  %920 = vmatpush1.msra.mxu0 0.0
  %921 = vmatprep.subr.mxu0 0.0
  %922 = vmatpush1.msra.mxu0 0.0
  %923 = vmatprep.subr.mxu0 0.0
  %924 = vmatpush1.msra.mxu0 0.0
  %925 = vmatprep.subr.mxu0 0.0
  %926 = vmatpush1.msra.mxu0 0.0
  %927 = vmatprep.subr.mxu0 0.0
  %928 = vmatpush1.msra.mxu0 0.0
  %929 = vmatprep.subr.mxu0 0.0
  %930 = vmatpush1.msra.mxu0 0.0
  %931 = vmatprep.mubr.f32.mxu0 0.0
  %932 = vmatmul.mubr.f32.gmra.mrb[0].mxu0 %v850
  %v933 = vpop.f32.mrb[0].mxu0
  %v934 = vadd.f32 0.0, %v933
  %v935 = vpop.f32.mrb[0].mxu0
  %936 = vmatprep.mubr.f32.mxu0 0.0
  %937 = vmatmul.mubr.f32.gmra.mrb[0].mxu0 %v853
  %v938 = vpop.f32.mrb[0].mxu0
  %v939 = vadd.f32 0.0, %v938
  %v940 = vpop.f32.mrb[0].mxu0
  %941 = vmatprep.mubr.f32.mxu0 0.0
  %942 = vmatmul.mubr.f32.gmra.mrb[0].mxu0 %v856
  %v943 = vpop.f32.mrb[0].mxu0
  %v944 = vadd.f32 0.0, %v943
  %v945 = vpop.f32.mrb[0].mxu0
  %946 = vmatprep.mubr.f32.mxu0 0.0
  %947 = vmatmul.mubr.f32.gmra.mrb[0].mxu0 %v859
  %v948 = vpop.f32.mrb[0].mxu0
  %v949 = vadd.f32 0.0, %v948
  %v950 = vpop.f32.mrb[0].mxu0
  %951 = vmatprep.mubr.f32.mxu0 0.0
  %952 = vmatmul.mubr.f32.gmra.mrb[0].mxu0 %v862
  %v953 = vpop.f32.mrb[0].mxu0
  %v954 = vadd.f32 0.0, %v953
  %v955 = vpop.f32.mrb[0].mxu0
  %956 = vmatprep.mubr.f32.mxu0 0.0
  %957 = vmatmul.mubr.f32.gmra.mrb[0].mxu0 %v865
  %v958 = vpop.f32.mrb[0].mxu0
  %v959 = vadd.f32 0.0, %v958
  %v960 = vpop.f32.mrb[0].mxu0
  %961 = vdwg.mxu0
  %962 = vmatprep.subr.mxu0 0.0
  %963 = vmatpush1.msra.mxu0 %v934
  %964 = vmatprep.subr.mxu0 0.0
  %965 = vmatpush1.msra.mxu0 %v939
  %966 = vmatprep.subr.mxu0 0.0
  %967 = vmatpush1.msra.mxu0 %v944
  %968 = vmatprep.subr.mxu0 0.0
  %969 = vmatpush1.msra.mxu0 %v949
  %970 = vmatprep.subr.mxu0 0.0
  %971 = vmatpush1.msra.mxu0 %v954
  %972 = vmatprep.subr.mxu0 0.0
  %973 = vmatpush1.msra.mxu0 %v959
  %974 = vmatprep.subr.mxu0 0.0
  %975 = vmatpush1.msra.mxu0 0.0
  %976 = vmatprep.subr.mxu0 0.0
  %977 = vmatpush1.msra.mxu0 0.0
  %978 = vmatprep.subr.mxu0 0.0
  %979 = vmatpush1.msra.mxu0 0.0
  %980 = vmatprep.subr.mxu0 0.0
  %981 = vmatpush1.msra.mxu0 0.0
  %982 = vmatprep.subr.mxu0 0.0
  %983 = vmatpush1.msra.mxu0 0.0
  %984 = vmatprep.subr.mxu0 0.0
  %985 = vmatpush1.msra.mxu0 0.0
  %986 = vmatprep.subr.mxu0 0.0
  %987 = vmatpush1.msra.mxu0 0.0
  %988 = vmatprep.subr.mxu0 0.0
  %989 = vmatpush1.msra.mxu0 0.0
  %990 = vmatprep.subr.mxu0 0.0
  %991 = vmatpush1.msra.mxu0 0.0
  %992 = vmatprep.subr.mxu0 0.0
  %993 = vmatpush1.msra.mxu0 0.0
  %994 = vmatprep.subr.mxu0 0.0
  %995 = vmatpush1.msra.mxu0 0.0
  %996 = vmatprep.subr.mxu0 0.0
  %997 = vmatpush1.msra.mxu0 0.0
  %998 = vmatprep.subr.mxu0 0.0
  %999 = vmatpush1.msra.mxu0 0.0
  %1000 = vmatprep.subr.mxu0 0.0
  %1001 = vmatpush1.msra.mxu0 0.0
  %1002 = vmatprep.subr.mxu0 0.0
  %1003 = vmatpush1.msra.mxu0 0.0
  %1004 = vmatprep.subr.mxu0 0.0
  %1005 = vmatpush1.msra.mxu0 0.0
  %1006 = vmatprep.subr.mxu0 0.0
  %1007 = vmatpush1.msra.mxu0 0.0
  %1008 = vmatprep.subr.mxu0 0.0
  %1009 = vmatpush1.msra.mxu0 0.0
  %1010 = vmatprep.subr.mxu0 0.0
  %1011 = vmatpush1.msra.mxu0 0.0
  %1012 = vmatprep.subr.mxu0 0.0
  %1013 = vmatpush1.msra.mxu0 0.0
  %1014 = vmatprep.subr.mxu0 0.0
  %1015 = vmatpush1.msra.mxu0 0.0
  %1016 = vmatprep.subr.mxu0 0.0
  %1017 = vmatpush1.msra.mxu0 0.0
  %1018 = vmatprep.subr.mxu0 0.0
  %1019 = vmatpush1.msra.mxu0 0.0
  %1020 = vmatprep.subr.mxu0 0.0
  %1021 = vmatpush1.msra.mxu0 0.0
  %1022 = vmatprep.subr.mxu0 0.0
  %1023 = vmatpush1.msra.mxu0 0.0
  %1024 = vmatprep.subr.mxu0 0.0
  %1025 = vmatpush1.msra.mxu0 0.0
  %1026 = vmatprep.mubr.f32.mxu0 0.0
  %1027 = vmatmul.mubr.f32.gmra.mrb[0].mxu0 %v737
  %v1028 = vpop.f32.mrb[0].mxu0
  %v1029 = vadd.f32 %v734, %v1028
  %v1030 = vpop.f32.mrb[0].mxu0
  %1031 = vmatprep.mubr.f32.mxu0 0.0
  %1032 = vmatmul.mubr.f32.gmra.mrb[0].mxu0 %v740
  %v1033 = vpop.f32.mrb[0].mxu0
  %v1034 = vadd.f32 %v734, %v1033
  %v1035 = vpop.f32.mrb[0].mxu0
  %1036 = vmatprep.mubr.f32.mxu0 0.0
  %1037 = vmatmul.mubr.f32.gmra.mrb[0].mxu0 %v743
  %v1038 = vpop.f32.mrb[0].mxu0
  %v1039 = vadd.f32 %v734, %v1038
  %v1040 = vpop.f32.mrb[0].mxu0
  %1041 = vmatprep.mubr.f32.mxu0 0.0
  %1042 = vmatmul.mubr.f32.gmra.mrb[0].mxu0 %v746
  %v1043 = vpop.f32.mrb[0].mxu0
  %v1044 = vadd.f32 %v734, %v1043
  %v1045 = vpop.f32.mrb[0].mxu0
  %1046 = vmatprep.mubr.f32.mxu0 0.0
  %1047 = vmatmul.mubr.f32.gmra.mrb[0].mxu0 %v749
  %v1048 = vpop.f32.mrb[0].mxu0
  %v1049 = vadd.f32 %v734, %v1048
  %v1050 = vpop.f32.mrb[0].mxu0
  %1051 = vmatprep.mubr.f32.mxu0 0.0
  %1052 = vmatmul.mubr.f32.gmra.mrb[0].mxu0 %v752
  %v1053 = vpop.f32.mrb[0].mxu0
  %v1054 = vadd.f32 %v734, %v1053
  %v1055 = vpop.f32.mrb[0].mxu0
  %1056 = vdwg.mxu0
  %v1057 = vadd.f32 %v821, %v1029
  %v1058 = vadd.f32 %v826, %v1034
  %v1059 = vadd.f32 %v831, %v1039
  %v1060 = vadd.f32 %v836, %v1044
  %v1061 = vadd.f32 %v841, %v1049
  %v1062 = vadd.f32 %v846, %v1054
  %v1063 = vmul.f32 %v1057, 0.5
  %v1064 = vmul.f32 %v1058, 0.5
  %v1065 = vmul.f32 %v1059, 0.5
  %v1066 = vmul.f32 %v1060, 0.5
  %v1067 = vmul.f32 %v1061, 0.5
  %v1068 = vmul.f32 %v1062, 0.5
  %v1069 = vsub.f32 %v821, %v1063
  %v1070 = vsub.f32 %v826, %v1064
  %v1071 = vsub.f32 %v831, %v1065
  %v1072 = vsub.f32 %v836, %v1066
  %v1073 = vsub.f32 %v841, %v1067
  %v1074 = vsub.f32 %v846, %v1068
  %v1075 = vsub.f32 %v1029, %v1063
  %v1076 = vsub.f32 %v1034, %v1064
  %v1077 = vsub.f32 %v1039, %v1065
  %v1078 = vsub.f32 %v1044, %v1066
  %v1079 = vsub.f32 %v1049, %v1067
  %v1080 = vsub.f32 %v1054, %v1068
  %v1081 = vmul.f32 %v1069, %v1069
  %v1082 = vmul.f32 %v1070, %v1070
  %v1083 = vmul.f32 %v1071, %v1071
  %v1084 = vmul.f32 %v1072, %v1072
  %v1085 = vmul.f32 %v1073, %v1073
  %v1086 = vmul.f32 %v1074, %v1074
  %v1087 = vmul.f32 %v1075, %v1075
  %v1088 = vmul.f32 %v1076, %v1076
  %v1089 = vmul.f32 %v1077, %v1077
  %v1090 = vmul.f32 %v1078, %v1078
  %v1091 = vmul.f32 %v1079, %v1079
  %v1092 = vmul.f32 %v1080, %v1080
  %v1093 = vadd.f32 %v1081, %v1087
  %v1094 = vadd.f32 %v1082, %v1088
  %v1095 = vadd.f32 %v1083, %v1089
  %v1096 = vadd.f32 %v1084, %v1090
  %v1097 = vadd.f32 %v1085, %v1091
  %v1098 = vadd.f32 %v1086, %v1092
  %v1099 = vmul.f32 %v1093, 0.5
  %v1100 = vmul.f32 %v1094, 0.5
  %v1101 = vmul.f32 %v1095, 0.5
  %v1102 = vmul.f32 %v1096, 0.5
  %v1103 = vmul.f32 %v1097, 0.5
  %v1104 = vmul.f32 %v1098, 0.5
  %v1105 = vadd.f32 %v1099, 1e-05
  %v1106 = vadd.f32 %v1100, 1e-05
  %v1107 = vadd.f32 %v1101, 1e-05
  %v1108 = vadd.f32 %v1102, 1e-05
  %v1109 = vadd.f32 %v1103, 1e-05
  %v1110 = vadd.f32 %v1104, 1e-05
  %v1111 = vrsqrt.pop %v1105
  %v1112 = vrsqrt.pop %v1106
  %v1113 = vrsqrt.pop %v1107
  %v1114 = vrsqrt.pop %v1108
  %v1115 = vrsqrt.pop %v1109
  %v1116 = vrsqrt.pop %v1110
  %s1117 = scalar_lea.vmem %s3, 48
  %v1118 = vld [vmem:[%s1117] sm:$0xff]
  %v1119 = vld [vmem:[%s1117 + $0x8] sm:$0xff]
  %v1120 = vld [vmem:[%s1117 + $0x10] sm:$0xff]
  %v1121 = vld [vmem:[%s1117 + $0x18] sm:$0xff]
  %v1122 = vld [vmem:[%s1117 + $0x20] sm:$0xff]
  %v1123 = vld [vmem:[%s1117 + $0x28] sm:$0xff]
  %v1124 = vmul.f32 %v1111, %v1118
  %v1125 = vmul.f32 %v1112, %v1119
  %v1126 = vmul.f32 %v1113, %v1120
  %v1127 = vmul.f32 %v1114, %v1121
  %v1128 = vmul.f32 %v1115, %v1122
  %v1129 = vmul.f32 %v1116, %v1123
  %s1130 = scalar_lea.vmem %s4, 48
  %v1131 = vld [vmem:[%s1130] sm:$0xff]
  %v1132 = vld [vmem:[%s1130 + $0x8] sm:$0xff]
  %v1133 = vld [vmem:[%s1130 + $0x10] sm:$0xff]
  %v1134 = vld [vmem:[%s1130 + $0x18] sm:$0xff]
  %v1135 = vld [vmem:[%s1130 + $0x20] sm:$0xff]
  %v1136 = vld [vmem:[%s1130 + $0x28] sm:$0xff]
  %v1137 = vmul.f32 %v1069, %v1124
  %v1138 = vmul.f32 %v1070, %v1125
  %v1139 = vmul.f32 %v1071, %v1126
  %v1140 = vmul.f32 %v1072, %v1127
  %v1141 = vmul.f32 %v1073, %v1128
  %v1142 = vmul.f32 %v1074, %v1129
  %v1143 = vadd.f32 %v1137, %v1131
  %v1144 = vadd.f32 %v1138, %v1132
  %v1145 = vadd.f32 %v1139, %v1133
  %v1146 = vadd.f32 %v1140, %v1134
  %v1147 = vadd.f32 %v1141, %v1135
  %v1148 = vadd.f32 %v1142, %v1136
  %v1149 = vtanh.pop %v1143
  %v1150 = vtanh.pop %v1144
  %v1151 = vtanh.pop %v1145
  %v1152 = vtanh.pop %v1146
  %v1153 = vtanh.pop %v1147
  %v1154 = vtanh.pop %v1148
  %v1155 = vmul.f32 %v1075, %v1124
  %v1156 = vmul.f32 %v1076, %v1125
  %v1157 = vmul.f32 %v1077, %v1126
  %v1158 = vmul.f32 %v1078, %v1127
  %v1159 = vmul.f32 %v1079, %v1128
  %v1160 = vmul.f32 %v1080, %v1129
  %v1161 = vadd.f32 %v1155, %v1131
  %v1162 = vadd.f32 %v1156, %v1132
  %v1163 = vadd.f32 %v1157, %v1133
  %v1164 = vadd.f32 %v1158, %v1134
  %v1165 = vadd.f32 %v1159, %v1135
  %v1166 = vadd.f32 %v1160, %v1136
  %v1167 = vtanh.pop %v1161
  %v1168 = vtanh.pop %v1162
  %v1169 = vtanh.pop %v1163
  %v1170 = vtanh.pop %v1164
  %v1171 = vtanh.pop %v1165
  %v1172 = vtanh.pop %v1166
  %v1173 = vadd.f32 %v1149, %v23
  %v1174 = vadd.f32 %v1150, %v24
  %v1175 = vadd.f32 %v1151, %v25
  %v1176 = vadd.f32 %v1152, %v26
  %v1177 = vadd.f32 %v1153, %v27
  %v1178 = vadd.f32 %v1154, %v28
  %1179 = vst.msk [vmem:[%s6] sm:$0xff] %vm47, %v1173
  %1180 = vst.msk [vmem:[%s6 + $0x8] sm:$0xff] %vm47, %v1174
  %1181 = vst.msk [vmem:[%s6 + $0x10] sm:$0xff] %vm47, %v1175
  %1182 = vst.msk [vmem:[%s6 + $0x18] sm:$0xff] %vm47, %v1176
  %1183 = vst.msk [vmem:[%s6 + $0x20] sm:$0xff] %vm47, %v1177
  %1184 = vst.msk [vmem:[%s6 + $0x28] sm:$0xff] %vm47, %v1178
  %v1185 = vadd.f32 %v1167, %v30
  %v1186 = vadd.f32 %v1168, %v31
  %v1187 = vadd.f32 %v1169, %v32
  %v1188 = vadd.f32 %v1170, %v33
  %v1189 = vadd.f32 %v1171, %v34
  %v1190 = vadd.f32 %v1172, %v35
  %s1191 = scalar_lea.vmem %s6, 48
  %1192 = vst.msk [vmem:[%s1191] sm:$0xff] %vm47, %v1185
  %1193 = vst.msk [vmem:[%s1191 + $0x8] sm:$0xff] %vm47, %v1186
  %1194 = vst.msk [vmem:[%s1191 + $0x10] sm:$0xff] %vm47, %v1187
  %1195 = vst.msk [vmem:[%s1191 + $0x18] sm:$0xff] %vm47, %v1188
  %1196 = vst.msk [vmem:[%s1191 + $0x20] sm:$0xff] %vm47, %v1189
  %1197 = vst.msk [vmem:[%s1191 + $0x28] sm:$0xff] %vm47, %v1190
  // Predicated region
  $region26: #{gc_block_forward.1} parent=0 // pred_check
    _
  $region27: #{gc_block_forward.1} parent=0 // pred_check_branch
    %1199 = sbr.rel (0) target = $region29
  $region28: #{gc_block_forward.1} parent=0 // pred_region
    _
  $region29: #{gc_block_forward.1} parent=0 // pred_fallthru
    _
  // Predicated region
  $region30: #{gc_block_forward.1} parent=0 // pred_check
    _
  $region31: #{gc_block_forward.1} parent=0 // pred_check_branch
    %1201 = sbr.rel (0) target = $region33
  $region32: #{gc_block_forward.1} parent=0 // pred_region
    _
  $region33: #{gc_block_forward.1} parent=0 // pred_fallthru
    _

</llo_original>
